<compile_context>
chip_gen: v6e
topology: v6e:2x2x1
jax: 0.10.0
libtpu: 0.0.40
codegen_flags: <defaults>
</compile_context>

<pallas_src>
import jax
import jax.numpy as jnp
from jax.experimental import pallas as pl
from jax.experimental.pallas import tpu as pltpu

LEAKY_SLOPE = 0.01   # nn.LeakyReLU() default negative_slope
LANE = 128           # TPU lane width
SUBLANE = 8          # f32 sublane height
MAX_TILE_B = 8192    # upper bound on rows per grid step (VMEM budget decides)


def _round_up(x, m):
    return (x + m - 1) // m * m


def _leaky_relu(x):
    # max(x, a*x) == LeakyReLU for 0 <= a <= 1: one vmul + one vmax (no select).
    return jnp.maximum(x, LEAKY_SLOPE * x)


def _vmem_capacity_bytes():
    """Per-core VMEM capacity; conservative fallback if the query is unavailable."""
    try:
        return int(pltpu.get_tpu_info().vmem_capacity_bytes)
    except Exception:
        return 64 << 20   # v7x per-TC size: safe lower bound for every generation


def mlp_kernel(x_ref, w1_ref, b1_ref, w2_ref, b2_ref, w3_ref, b3_ref, o_ref):
    """Fused fc1 + LeakyReLU + fc2 + LeakyReLU + fc3 on one (tile_b, in_dim) tile.

    Weights are bf16 (MXU), bias add and LeakyReLU stay in f32 (v5e VPU has no
    bf16).  Activations are fed to the MXU in bf16 — a deliberate, documented
    divergence from a pure-f32 reference (negligible for a classifier head).
    """
    x = x_ref[...].astype(jnp.bfloat16)

    h = jnp.dot(x, w1_ref[...], preferred_element_type=jnp.float32) + b1_ref[...]
    h = _leaky_relu(h)
    # dropout (eval mode) == identity

    h = jnp.dot(h.astype(jnp.bfloat16), w2_ref[...],
                preferred_element_type=jnp.float32) + b2_ref[...]
    h = _leaky_relu(h)
    # dropout (eval mode) == identity

    out = jnp.dot(h.astype(jnp.bfloat16), w3_ref[...],
                  preferred_element_type=jnp.float32) + b3_ref[...]
    o_ref[...] = out.astype(o_ref.dtype)


def prepare_params(params):
    """One-time parameter prep (hoisted out of the per-call wrapper, cache result).

    Hidden dim is zero-padded to a lane multiple — numerically exact: padded
    hidden units have zero weight+bias -> LeakyReLU(0)=0 -> zero contribution
    downstream.  The OUTPUT dim is left unpadded so the kernel writes only
    out_dim useful f32 lanes back to HBM.  Weights are cast to bf16 for the MXU.
    """
    hid = params["w1"].shape[1]
    hid_p = _round_up(hid, LANE)
    dh = hid_p - hid
    return {
        "w1": jnp.pad(params["w1"], ((0, 0), (0, dh))).astype(jnp.bfloat16),
        "b1": jnp.pad(params["b1"], ((0, 0), (0, dh))).astype(jnp.float32),
        "w2": jnp.pad(params["w2"], ((0, dh), (0, dh))).astype(jnp.bfloat16),
        "b2": jnp.pad(params["b2"], ((0, 0), (0, dh))).astype(jnp.float32),
        "w3": jnp.pad(params["w3"], ((0, dh), (0, 0))).astype(jnp.bfloat16),
        "b3": params["b3"].astype(jnp.float32),
    }


def myclassifier_forward(x, prepped, *, tile_b=None):
    """x: (B, in_dim) f32 or bf16.  prepped: output of prepare_params()."""
    B, in_dim = x.shape
    hid_p = prepped["w1"].shape[1]
    out_dim = prepped["w3"].shape[1]
    x_isz = jnp.dtype(x.dtype).itemsize

    weight_bytes = sum(int(p.size) * jnp.dtype(p.dtype).itemsize
                       for p in prepped.values())
    vmem_cap = _vmem_capacity_bytes()

    # VMEM one batch row costs: double-buffered x/out tiles + f32 intermediates
    # (h tiles, MXU results, bf16 copies).
    per_row = 2 * in_dim * x_isz + 2 * out_dim * 4 + 4 * hid_p * 4

    if tile_b is None:
        # Weights are double-buffered by default (constant index_map) -> count 2x.
        usable = int(0.70 * vmem_cap) - 2 * weight_bytes
        tile_b = max(SUBLANE,
                     min(MAX_TILE_B, (usable // per_row) // SUBLANE * SUBLANE))
        # Keep >=2 grid steps when possible so the "parallel" batch axis can be
        # sharded across v7x's two TensorCores (no-op on single-TC v5e/v6e).
        tile_b = min(tile_b, max(SUBLANE, _round_up(pl.cdiv(B, 2), SUBLANE)))
    tile_b = max(SUBLANE, _round_up(tile_b, SUBLANE))

    # No batch padding: Pallas masks the partial last block's OOB rows on write.
    grid = (pl.cdiv(B, tile_b),)

    needed = 2 * weight_bytes + tile_b * per_row + (4 << 20)
    vmem_limit = int(min(max(int(1.5 * needed), 32 << 20), int(0.85 * vmem_cap)))

    flops = 2 * B * (in_dim * hid_p + hid_p * hid_p + hid_p * out_dim)
    bytes_accessed = int(B * (in_dim * x_isz + out_dim * 4) + weight_bytes)

    out = pl.pallas_call(
        mlp_kernel,
        out_shape=jax.ShapeDtypeStruct((B, out_dim), jnp.float32),
        grid_spec=pltpu.PrefetchScalarGridSpec(
            num_scalar_prefetch=0,
            grid=grid,
            in_specs=[
                pl.BlockSpec((tile_b, in_dim), lambda i: (i, 0)),   # x tile (pipelined)
                pl.BlockSpec((in_dim, hid_p), lambda i: (0, 0)),    # w1 (VMEM-resident)
                pl.BlockSpec((1, hid_p), lambda i: (0, 0)),         # b1
                pl.BlockSpec((hid_p, hid_p), lambda i: (0, 0)),     # w2
                pl.BlockSpec((1, hid_p), lambda i: (0, 0)),         # b2
                pl.BlockSpec((hid_p, out_dim), lambda i: (0, 0)),   # w3 (unpadded N)
                pl.BlockSpec((1, out_dim), lambda i: (0, 0)),       # b3
            ],
            out_specs=pl.BlockSpec((tile_b, out_dim), lambda i: (i, 0)),
        ),
        compiler_params=pltpu.CompilerParams(
            dimension_semantics=("parallel",),      # shard batch across v7x's 2 TCs
            vmem_limit_bytes=vmem_limit,
        ),
        cost_estimate=pl.CostEstimate(
            flops=flops, transcendentals=0, bytes_accessed=bytes_accessed),
    )(x, prepped["w1"], prepped["b1"], prepped["w2"], prepped["b2"],
      prepped["w3"], prepped["b3"])

    return out


def init_params(key, in_dim, out_dim):
    """weights_init: weight ~ N(0, 0.02), bias = 0.  W stored as (in, out) for x @ W."""
    hid = in_dim // 2
    k1, k2, k3 = jax.random.split(key, 3)
    return {
        "w1": 0.02 * jax.random.normal(k1, (in_dim, hid), jnp.float32),
        "b1": jnp.zeros((1, hid), jnp.float32),
        "w2": 0.02 * jax.random.normal(k2, (hid, hid), jnp.float32),
        "b2": jnp.zeros((1, hid), jnp.float32),
        "w3": 0.02 * jax.random.normal(k3, (hid, out_dim), jnp.float32),
        "b3": jnp.zeros((1, out_dim), jnp.float32),
    }


def reference_forward(x, params):
    """Pure-JAX reference (eval mode), using the same bf16-rounded weights."""
    def wf32(w):
        return w.astype(jnp.bfloat16).astype(jnp.float32)
    h = _leaky_relu(x @ wf32(params["w1"]) + params["b1"])
    h = _leaky_relu(h @ wf32(params["w2"]) + params["b2"])
    return h @ wf32(params["w3"]) + params["b3"]


if __name__ == "__main__":
    in_dim, out_dim, batch = 64, 8, 8

    key = jax.random.PRNGKey(0)
    kx, kp = jax.random.split(key)
    x = jax.random.normal(kx, (batch, in_dim), jnp.float32)
    params = init_params(kp, in_dim, out_dim)

    prepped = prepare_params(params)          # one-time prep (hoisted out of forward)
    out = jax.block_until_ready(myclassifier_forward(x, prepped))

    ref = reference_forward(x, params)
    assert out.shape == (batch, out_dim)
    max_err = float(jnp.max(jnp.abs(out - ref)))
    tol = max(0.05 * float(jnp.max(jnp.abs(ref))), 1e-6)
    assert max_err <= tol, f"mismatch vs JAX reference: {max_err} > {tol}"

    print("KERNEL_OK")
</pallas_src>

<mosaic_0001>
module attributes {stable_mosaic.version = 11 : i64} {
  func.func @mlp_kernel(%arg0: i32, %arg1: memref<8x64xf32, #tpu.memory_space<vmem>>, %arg2: memref<64x128xbf16, #tpu.memory_space<vmem>>, %arg3: memref<1x128xf32, #tpu.memory_space<vmem>>, %arg4: memref<128x128xbf16, #tpu.memory_space<vmem>>, %arg5: memref<1x128xf32, #tpu.memory_space<vmem>>, %arg6: memref<128x8xbf16, #tpu.memory_space<vmem>>, %arg7: memref<1x8xf32, #tpu.memory_space<vmem>>, %arg8: memref<8x8xf32, #tpu.memory_space<vmem>>) attributes {dimension_semantics = [#tpu.dimension_semantics<parallel>], iteration_bounds = array<i64: 1>, scalar_prefetch = 0 : i64, scratch_operands = 0 : i64, tpu.core_type = #tpu.core_type<tc>, window_params = [{transform_indices = @transform_0, window_bounds = array<i64: 8, 64>}, {pipeline_mode = #tpu.pipeline_mode<synchronous>, transform_indices = @transform_1, window_bounds = array<i64: 64, 128>}, {pipeline_mode = #tpu.pipeline_mode<synchronous>, transform_indices = @transform_2, window_bounds = array<i64: 1, 128>}, {pipeline_mode = #tpu.pipeline_mode<synchronous>, transform_indices = @transform_3, window_bounds = array<i64: 128, 128>}, {pipeline_mode = #tpu.pipeline_mode<synchronous>, transform_indices = @transform_4, window_bounds = array<i64: 1, 128>}, {pipeline_mode = #tpu.pipeline_mode<synchronous>, transform_indices = @transform_5, window_bounds = array<i64: 128, 8>}, {pipeline_mode = #tpu.pipeline_mode<synchronous>, transform_indices = @transform_6, window_bounds = array<i64: 1, 8>}, {transform_indices = @transform_7, window_bounds = array<i64: 8, 8>}]} {
    %c0 = arith.constant 0 : index
    %c0_0 = arith.constant 0 : index
    %0 = vector.load %arg1[%c0, %c0_0] : memref<8x64xf32, #tpu.memory_space<vmem>>, vector<8x64xf32>
    %1 = arith.truncf %0 : vector<8x64xf32> to vector<8x64xbf16>
    %c0_1 = arith.constant 0 : index
    %c0_2 = arith.constant 0 : index
    %2 = vector.load %arg2[%c0_1, %c0_2] : memref<64x128xbf16, #tpu.memory_space<vmem>>, vector<64x128xbf16>
    %cst = arith.constant dense<0.000000e+00> : vector<8x128xf32>
    %3 = tpu.matmul %1, %2, %cst {dimension_numbers = #tpu.dot_dimension_numbers<[1], [0], [0], [1], [0, 0, 1, 1], [], []>} : vector<8x64xbf16>, vector<64x128xbf16>, vector<8x128xf32> -> vector<8x128xf32>
    %c0_3 = arith.constant 0 : index
    %c0_4 = arith.constant 0 : index
    %4 = vector.load %arg3[%c0_3, %c0_4] : memref<1x128xf32, #tpu.memory_space<vmem>>, vector<1x128xf32>
    %5 = vector.broadcast %4 : vector<1x128xf32> to vector<8x128xf32>
    %6 = arith.addf %3, %5 : vector<8x128xf32>
    %cst_5 = arith.constant 0.00999999977 : f32
    %7 = vector.broadcast %cst_5 : f32 to vector<8x128xf32>
    %8 = arith.mulf %7, %6 : vector<8x128xf32>
    %9 = arith.maximumf %6, %8 : vector<8x128xf32>
    %10 = arith.truncf %9 : vector<8x128xf32> to vector<8x128xbf16>
    %c0_6 = arith.constant 0 : index
    %c0_7 = arith.constant 0 : index
    %11 = vector.load %arg4[%c0_6, %c0_7] : memref<128x128xbf16, #tpu.memory_space<vmem>>, vector<128x128xbf16>
    %cst_8 = arith.constant dense<0.000000e+00> : vector<8x128xf32>
    %12 = tpu.matmul %10, %11, %cst_8 {dimension_numbers = #tpu.dot_dimension_numbers<[1], [0], [0], [1], [0, 0, 1, 1], [], []>} : vector<8x128xbf16>, vector<128x128xbf16>, vector<8x128xf32> -> vector<8x128xf32>
    %c0_9 = arith.constant 0 : index
    %c0_10 = arith.constant 0 : index
    %13 = vector.load %arg5[%c0_9, %c0_10] : memref<1x128xf32, #tpu.memory_space<vmem>>, vector<1x128xf32>
    %14 = vector.broadcast %13 : vector<1x128xf32> to vector<8x128xf32>
    %15 = arith.addf %12, %14 : vector<8x128xf32>
    %cst_11 = arith.constant 0.00999999977 : f32
    %16 = vector.broadcast %cst_11 : f32 to vector<8x128xf32>
    %17 = arith.mulf %16, %15 : vector<8x128xf32>
    %18 = arith.maximumf %15, %17 : vector<8x128xf32>
    %19 = arith.truncf %18 : vector<8x128xf32> to vector<8x128xbf16>
    %c0_12 = arith.constant 0 : index
    %c0_13 = arith.constant 0 : index
    %20 = vector.load %arg6[%c0_12, %c0_13] : memref<128x8xbf16, #tpu.memory_space<vmem>>, vector<128x8xbf16>
    %cst_14 = arith.constant dense<0.000000e+00> : vector<8x8xf32>
    %21 = tpu.matmul %19, %20, %cst_14 {dimension_numbers = #tpu.dot_dimension_numbers<[1], [0], [0], [1], [0, 0, 1, 1], [], []>} : vector<8x128xbf16>, vector<128x8xbf16>, vector<8x8xf32> -> vector<8x8xf32>
    %c0_15 = arith.constant 0 : index
    %c0_16 = arith.constant 0 : index
    %22 = vector.load %arg7[%c0_15, %c0_16] : memref<1x8xf32, #tpu.memory_space<vmem>>, vector<1x8xf32>
    %23 = vector.broadcast %22 : vector<1x8xf32> to vector<8x8xf32>
    %24 = arith.addf %21, %23 : vector<8x8xf32>
    %c0_17 = arith.constant 0 : index
    %c0_18 = arith.constant 0 : index
    %25 = vector.load %arg8[%c0_17, %c0_18] : memref<8x8xf32, #tpu.memory_space<vmem>>, vector<8x8xf32>
    tpu.vector_store %arg8[%c0_17, %c0_18], %24 {strides = array<i32>} : memref<8x8xf32, #tpu.memory_space<vmem>>, vector<8x8xf32>,
    return
  }
  func.func @transform_0(%arg0: i32) -> (i32, i32) {
    %c0_i32 = arith.constant 0 : i32
    %c0_i32_0 = arith.constant 0 : i32
    return %arg0, %c0_i32 : i32, i32
  }
  func.func @transform_1(%arg0: i32) -> (i32, i32) {
    %c0_i32 = arith.constant 0 : i32
    %c0_i32_0 = arith.constant 0 : i32
    %c0_i32_1 = arith.constant 0 : i32
    return %c0_i32, %c0_i32_0 : i32, i32
  }
  func.func @transform_2(%arg0: i32) -> (i32, i32) {
    %c0_i32 = arith.constant 0 : i32
    %c0_i32_0 = arith.constant 0 : i32
    %c0_i32_1 = arith.constant 0 : i32
    return %c0_i32, %c0_i32_0 : i32, i32
  }
  func.func @transform_3(%arg0: i32) -> (i32, i32) {
    %c0_i32 = arith.constant 0 : i32
    %c0_i32_0 = arith.constant 0 : i32
    %c0_i32_1 = arith.constant 0 : i32
    return %c0_i32, %c0_i32_0 : i32, i32
  }
  func.func @transform_4(%arg0: i32) -> (i32, i32) {
    %c0_i32 = arith.constant 0 : i32
    %c0_i32_0 = arith.constant 0 : i32
    %c0_i32_1 = arith.constant 0 : i32
    return %c0_i32, %c0_i32_0 : i32, i32
  }
  func.func @transform_5(%arg0: i32) -> (i32, i32) {
    %c0_i32 = arith.constant 0 : i32
    %c0_i32_0 = arith.constant 0 : i32
    %c0_i32_1 = arith.constant 0 : i32
    return %c0_i32, %c0_i32_0 : i32, i32
  }
  func.func @transform_6(%arg0: i32) -> (i32, i32) {
    %c0_i32 = arith.constant 0 : i32
    %c0_i32_0 = arith.constant 0 : i32
    %c0_i32_1 = arith.constant 0 : i32
    return %c0_i32, %c0_i32_0 : i32, i32
  }
  func.func @transform_7(%arg0: i32) -> (i32, i32) {
    %c0_i32 = arith.constant 0 : i32
    %c0_i32_0 = arith.constant 0 : i32
    return %arg0, %c0_i32 : i32, i32
  }
}

</mosaic_0001>

<llo_original>
// kernel: tpu_custom_call.1
$region0: #{tpu_custom_call.1}
  #allocation0 [shape = 'u32[]', space=smem, size = 0x4, offset = 0x4, fixed_abs, tag = 'smem constant byte address 0x4 - core index']
  #allocation1 [shape = 'u32[144,128]{1,0:T(1,128)}', space=vmem, size = 0x12000, scoped, tag = 'internal scratch']
  %s0 = inlined_call_operand.vmem [shape: f32[8,64], index: 0, kind: input, shape index: {}]
  %s1 = inlined_call_operand.hbm [shape: bf16[64,128], index: 1, kind: input, shape index: {}]
  %s2 = inlined_call_operand.vmem [shape: f32[1,128], index: 2, kind: input, shape index: {}]
  %s3 = inlined_call_operand.vmem [shape: bf16[128,128], index: 3, kind: input, shape index: {}]
  %s4 = inlined_call_operand.hbm [shape: f32[1,128], index: 4, kind: input, shape index: {}]
  %s5 = inlined_call_operand.vmem [shape: bf16[128,8], index: 5, kind: input, shape index: {}]
  %s6 = inlined_call_operand.vmem [shape: f32[1,8], index: 6, kind: input, shape index: {}]
  %s7 = inlined_call_operand.hbm [shape: f32[8,8], index: 7, kind: output, shape index: {}]
  %s8 = sld [smem:[#allocation0]]
  $region46: #{tpu_custom_call.1} parent=0
    _
  %s10 = ssub.s32 1, %s8
  %s11 = scalar_select 0, %s10, %s8
  $region1: #{tpu_custom_call.1} parent=0
    #allocation2 [shape = 'u8[16384]{0}', space=vmem, size = 0x4000, scoped, tag = 'input window, operand 1, single buffered']
    #allocation3 [shape = 's32[1]{0}', space=sflag, size = 0x4, scoped, tag = 'scoped memory for tpu_custom_call.1']
    #allocation4 [shape = 's32[1]{0}', space=sflag, size = 0x4, scoped, tag = 'scoped memory for tpu_custom_call.1']
    #allocation5 [shape = 'u8[512]{0}', space=vmem, size = 0x400, scoped, tag = 'input window, operand 4, single buffered']
    #allocation6 [shape = 's32[1]{0}', space=sflag, size = 0x4, scoped, tag = 'scoped memory for tpu_custom_call.1']
    #allocation7 [shape = 'u8[4096]{0}', space=vmem, size = 0x1000, scoped, tag = 'output window, operand 0, single buffered']
    %12 = vsyncpa [#allocation3], 0
    %13 = vsyncpa [#allocation6], 0
    %14 = vsyncpa [#allocation4], 0
    // Predicated region
    $region2: #{tpu_custom_call.1} parent=1 // pred_check
      _
    $region3: #{tpu_custom_call.1} parent=1 // pred_check_branch
      %16 = sbr.rel (0) target = $region5
    $region4: #{tpu_custom_call.1} parent=1 // pred_region
      _
    $region5: #{tpu_custom_call.1} parent=1 // pred_fallthru
      _
    // Predicated region
    $region6: #{tpu_custom_call.1} parent=1 // pred_check
      _
    $region7: #{tpu_custom_call.1} parent=1 // pred_check_branch
      %18 = sbr.rel (0) target = $region9
    $region8: #{tpu_custom_call.1} parent=1 // pred_region
      %s20 = ssub.s32 512, 512
      %21 = vsyncadd [#allocation3], %s20
      %s22 = sshll.u32 [#allocation2], 4
      %s23 = int_to_ptr.vmem [resolvable:$true] %s22
      %28 = dma.hbm_to_vmem [thread:$0]  %s1, 512, %s23, [#allocation3], 64, 64, 4
    $region9: #{tpu_custom_call.1} parent=1 // pred_fallthru
      _
    // Predicated region
    $region10: #{tpu_custom_call.1} parent=1 // pred_check
      _
    $region11: #{tpu_custom_call.1} parent=1 // pred_check_branch
      %30 = sbr.rel (0) target = $region13
    $region12: #{tpu_custom_call.1} parent=1 // pred_region
      _
    $region13: #{tpu_custom_call.1} parent=1 // pred_fallthru
      _
    // Predicated region
    $region14: #{tpu_custom_call.1} parent=1 // pred_check
      _
    $region15: #{tpu_custom_call.1} parent=1 // pred_check_branch
      %32 = sbr.rel (0) target = $region17
    $region16: #{tpu_custom_call.1} parent=1 // pred_region
      _
    $region17: #{tpu_custom_call.1} parent=1 // pred_fallthru
      _
    // Predicated region
    $region18: #{tpu_custom_call.1} parent=1 // pred_check
      _
    $region19: #{tpu_custom_call.1} parent=1 // pred_check_branch
      %34 = sbr.rel (0) target = $region21
    $region20: #{tpu_custom_call.1} parent=1 // pred_region
      %s36 = ssub.s32 16, 16
      %37 = vsyncadd [#allocation6], %s36
      %s39 = sshll.u32 [#allocation5], 4
      %s40 = int_to_ptr.vmem [resolvable:$true] %s39
      %42 = dma.hbm_to_vmem [thread:$0]  %s4, 16, %s40, [#allocation6]
    $region21: #{tpu_custom_call.1} parent=1 // pred_fallthru
      _
    // Predicated region
    $region22: #{tpu_custom_call.1} parent=1 // pred_check
      _
    $region23: #{tpu_custom_call.1} parent=1 // pred_check_branch
      %44 = sbr.rel (0) target = $region25
    $region24: #{tpu_custom_call.1} parent=1 // pred_region
      _
    $region25: #{tpu_custom_call.1} parent=1 // pred_fallthru
      _
    // Predicated region
    $region26: #{tpu_custom_call.1} parent=1 // pred_check
      _
    $region27: #{tpu_custom_call.1} parent=1 // pred_check_branch
      %46 = sbr.rel (0) target = $region29
    $region28: #{tpu_custom_call.1} parent=1 // pred_region
      _
    $region29: #{tpu_custom_call.1} parent=1 // pred_fallthru
      _
    // Predicated region
    $region30: #{tpu_custom_call.1} parent=1 // pred_check
      _
    $region31: #{tpu_custom_call.1} parent=1 // pred_check_branch
      %48 = sbr.rel (0) target = $region33
    $region32: #{tpu_custom_call.1} parent=1 // pred_region
      %49 = dma.done [#allocation3], 512
    $region33: #{tpu_custom_call.1} parent=1 // pred_fallthru
      _
    // Predicated region
    $region34: #{tpu_custom_call.1} parent=1 // pred_check
      _
    $region35: #{tpu_custom_call.1} parent=1 // pred_check_branch
      %51 = sbr.rel (0) target = $region37
    $region36: #{tpu_custom_call.1} parent=1 // pred_region
      %52 = dma.done [#allocation6], 16
    $region37: #{tpu_custom_call.1} parent=1 // pred_fallthru
      _
    %v54 = vld [vmem:[%s0] sm:$0xff]
    %v55 = vpack.c.bf16 %v54, %v54
    %v56 = vld [vmem:[#allocation2] sm:$0xf]
    %v57 = vld [vmem:[#allocation2 + $0x4] sm:$0xf]
    %v58 = vld [vmem:[#allocation2 + $0x8] sm:$0xf]
    %v59 = vld [vmem:[#allocation2 + $0xc] sm:$0xf]
    %v60 = vld [vmem:[#allocation2 + $0x10] sm:$0xf]
    %v61 = vld [vmem:[#allocation2 + $0x14] sm:$0xf]
    %v62 = vld [vmem:[#allocation2 + $0x18] sm:$0xf]
    %v63 = vld [vmem:[#allocation2 + $0x1c] sm:$0xf]
    %v64 = vld [vmem:[%s2] sm:$0x1]
    %v66 = vlaneseq
    %v67 = vshrl.u32 %v66, 7
    %v68 = vsub.s32 0, %v67
    %v69 = vrot.slane %v64, %v68
    %v79 = vunpack.c.l.b16 %v56
    %v80 = vunpack.c.l.b16 %v57
    %v81 = vunpack.c.l.b16 %v58
    %v82 = vunpack.c.l.b16 %v59
    %v83 = vunpack.c.l.b16 %v60
    %v84 = vunpack.c.l.b16 %v61
    %v85 = vunpack.c.l.b16 %v62
    %v86 = vunpack.c.l.b16 %v63
    %v87 = vpack.c.b16 %v80, %v79
    %v88 = vpack.c.b16 %v82, %v81
    %v89 = vpack.c.b16 %v84, %v83
    %v90 = vpack.c.b16 %v86, %v85
    %vm95 = vcmask 523264
    %v97 = vsel %vm95, %v55, 0
    %99 = vmatprep.subr.bf16.mxu0 0
    %100 = vmatpush1.bf16.msra.mxu0 0
    %101 = vmatprep.subr.bf16.mxu0 0
    %102 = vmatpush1.bf16.msra.mxu0 0
    %103 = vmatprep.subr.bf16.mxu0 0
    %104 = vmatpush1.bf16.msra.mxu0 0
    %105 = vmatprep.subr.bf16.mxu0 0
    %106 = vmatpush1.bf16.msra.mxu0 0
    %107 = vmatprep.subr.bf16.mxu0 0
    %108 = vmatpush1.bf16.msra.mxu0 %v90
    %109 = vmatprep.subr.bf16.mxu0 0
    %110 = vmatpush1.bf16.msra.mxu0 %v89
    %111 = vmatprep.subr.bf16.mxu0 0
    %112 = vmatpush1.bf16.msra.mxu0 %v88
    %113 = vmatprep.subr.bf16.mxu0 0
    %114 = vmatpush1.bf16.msra.mxu0 %v87
    %115 = vmatprep.subr.bf16.mxu0 0
    %116 = vmatpush2.bf16.msra.mxu0 0
    %117 = vmatprep.subr.bf16.mxu0 0
    %118 = vmatpush2.bf16.msra.mxu0 0
    %119 = vmatprep.subr.bf16.mxu0 0
    %120 = vmatpush2.bf16.msra.mxu0 0
    %121 = vmatprep.subr.bf16.mxu0 0
    %122 = vmatpush2.bf16.msra.mxu0 0
    %123 = vmatprep.subr.bf16.mxu0 0
    %124 = vmatpush2.bf16.msra.mxu0 0
    %125 = vmatprep.subr.bf16.mxu0 0
    %126 = vmatpush2.bf16.msra.mxu0 0
    %127 = vmatprep.subr.bf16.mxu0 0
    %128 = vmatpush2.bf16.msra.mxu0 0
    %129 = vmatprep.subr.bf16.mxu0 0
    %130 = vmatpush2.bf16.msra.mxu0 0
    %131 = vmatprep.mubr.bf16.mxu0 0
    %132 = vmatmul.mubr.bf16.gmra.mxu0 %v97
    %v133 = vpop.f32.mrf.mxu0
    %v134 = vadd.f32 %v69, %v133
    %v135 = vpop.f32.mrf.mxu0
    %v136 = vpop.f32.mrf.mxu0
    %v137 = vpop.f32.mrf.mxu0
    %138 = vdwg.mxu0
    %v139 = vmul.f32 %v134, 0.01
    %v140 = vmax.f32 %v134, %v139
    %v141 = vpack.c.bf16 %v140, %v140
    %v142 = vld [vmem:[%s3] sm:$0xf]
    %v143 = vld [vmem:[%s3 + $0x4] sm:$0xf]
    %v144 = vld [vmem:[%s3 + $0x8] sm:$0xf]
    %v145 = vld [vmem:[%s3 + $0xc] sm:$0xf]
    %v146 = vld [vmem:[%s3 + $0x10] sm:$0xf]
    %v147 = vld [vmem:[%s3 + $0x14] sm:$0xf]
    %v148 = vld [vmem:[%s3 + $0x18] sm:$0xf]
    %v149 = vld [vmem:[%s3 + $0x1c] sm:$0xf]
    %v150 = vld [vmem:[%s3 + $0x20] sm:$0xf]
    %v151 = vld [vmem:[%s3 + $0x24] sm:$0xf]
    %v152 = vld [vmem:[%s3 + $0x28] sm:$0xf]
    %v153 = vld [vmem:[%s3 + $0x2c] sm:$0xf]
    %v154 = vld [vmem:[%s3 + $0x30] sm:$0xf]
    %v155 = vld [vmem:[%s3 + $0x34] sm:$0xf]
    %v156 = vld [vmem:[%s3 + $0x38] sm:$0xf]
    %v157 = vld [vmem:[%s3 + $0x3c] sm:$0xf]
    %v158 = vld [vmem:[#allocation5] sm:$0x1]
    %v160 = vlaneseq
    %v161 = vshrl.u32 %v160, 7
    %v162 = vsub.s32 0, %v161
    %v163 = vrot.slane %v158, %v162
    %v181 = vunpack.c.l.b16 %v142
    %v182 = vunpack.c.l.b16 %v143
    %v183 = vunpack.c.l.b16 %v144
    %v184 = vunpack.c.l.b16 %v145
    %v185 = vunpack.c.l.b16 %v146
    %v186 = vunpack.c.l.b16 %v147
    %v187 = vunpack.c.l.b16 %v148
    %v188 = vunpack.c.l.b16 %v149
    %v189 = vunpack.c.l.b16 %v150
    %v190 = vunpack.c.l.b16 %v151
    %v191 = vunpack.c.l.b16 %v152
    %v192 = vunpack.c.l.b16 %v153
    %v193 = vunpack.c.l.b16 %v154
    %v194 = vunpack.c.l.b16 %v155
    %v195 = vunpack.c.l.b16 %v156
    %v196 = vunpack.c.l.b16 %v157
    %v197 = vpack.c.b16 %v182, %v181
    %v198 = vpack.c.b16 %v184, %v183
    %v199 = vpack.c.b16 %v186, %v185
    %v200 = vpack.c.b16 %v188, %v187
    %v201 = vpack.c.b16 %v190, %v189
    %v202 = vpack.c.b16 %v192, %v191
    %v203 = vpack.c.b16 %v194, %v193
    %v204 = vpack.c.b16 %v196, %v195
    %213 = vmatprep.subr.bf16.mxu0 0
    %214 = vmatpush1.bf16.msra.mxu0 %v204
    %215 = vmatprep.subr.bf16.mxu0 0
    %216 = vmatpush1.bf16.msra.mxu0 %v203
    %217 = vmatprep.subr.bf16.mxu0 0
    %218 = vmatpush1.bf16.msra.mxu0 %v202
    %219 = vmatprep.subr.bf16.mxu0 0
    %220 = vmatpush1.bf16.msra.mxu0 %v201
    %221 = vmatprep.subr.bf16.mxu0 0
    %222 = vmatpush1.bf16.msra.mxu0 %v200
    %223 = vmatprep.subr.bf16.mxu0 0
    %224 = vmatpush1.bf16.msra.mxu0 %v199
    %225 = vmatprep.subr.bf16.mxu0 0
    %226 = vmatpush1.bf16.msra.mxu0 %v198
    %227 = vmatprep.subr.bf16.mxu0 0
    %228 = vmatpush1.bf16.msra.mxu0 %v197
    %229 = vmatprep.subr.bf16.mxu0 0
    %230 = vmatpush2.bf16.msra.mxu0 0
    %231 = vmatprep.subr.bf16.mxu0 0
    %232 = vmatpush2.bf16.msra.mxu0 0
    %233 = vmatprep.subr.bf16.mxu0 0
    %234 = vmatpush2.bf16.msra.mxu0 0
    %235 = vmatprep.subr.bf16.mxu0 0
    %236 = vmatpush2.bf16.msra.mxu0 0
    %237 = vmatprep.subr.bf16.mxu0 0
    %238 = vmatpush2.bf16.msra.mxu0 0
    %239 = vmatprep.subr.bf16.mxu0 0
    %240 = vmatpush2.bf16.msra.mxu0 0
    %241 = vmatprep.subr.bf16.mxu0 0
    %242 = vmatpush2.bf16.msra.mxu0 0
    %243 = vmatprep.subr.bf16.mxu0 0
    %244 = vmatpush2.bf16.msra.mxu0 0
    %245 = vmatprep.mubr.bf16.mxu0 0
    %246 = vmatmul.mubr.bf16.gmra.mxu0 %v141
    %v247 = vpop.f32.mrf.mxu0
    %v248 = vadd.f32 %v163, %v247
    %v249 = vpop.f32.mrf.mxu0
    %v250 = vpop.f32.mrf.mxu0
    %v251 = vpop.f32.mrf.mxu0
    %252 = vdwg.mxu0
    %v253 = vmul.f32 %v248, 0.01
    %v254 = vmax.f32 %v248, %v253
    %v255 = vpack.c.bf16 %v254, %v254
    %v256 = vld [vmem:[%s5] sm:$0xf]
    %v257 = vld [vmem:[%s5 + $0x4] sm:$0xf]
    %v258 = vld [vmem:[%s5 + $0x8] sm:$0xf]
    %v259 = vld [vmem:[%s5 + $0xc] sm:$0xf]
    %v260 = vld [vmem:[%s5 + $0x10] sm:$0xf]
    %v261 = vld [vmem:[%s5 + $0x14] sm:$0xf]
    %v262 = vld [vmem:[%s5 + $0x18] sm:$0xf]
    %v263 = vld [vmem:[%s5 + $0x1c] sm:$0xf]
    %v264 = vld [vmem:[%s5 + $0x20] sm:$0xf]
    %v265 = vld [vmem:[%s5 + $0x24] sm:$0xf]
    %v266 = vld [vmem:[%s5 + $0x28] sm:$0xf]
    %v267 = vld [vmem:[%s5 + $0x2c] sm:$0xf]
    %v268 = vld [vmem:[%s5 + $0x30] sm:$0xf]
    %v269 = vld [vmem:[%s5 + $0x34] sm:$0xf]
    %v270 = vld [vmem:[%s5 + $0x38] sm:$0xf]
    %v271 = vld [vmem:[%s5 + $0x3c] sm:$0xf]
    %v272 = vld [vmem:[%s6] sm:$0x1]
    %v274 = vlaneseq
    %v275 = vshrl.u32 %v274, 7
    %v276 = vsub.s32 0, %v275
    %v277 = vrot.slane %v272, %v276
    %v295 = vunpack.c.l.b16 %v256
    %v296 = vunpack.c.l.b16 %v257
    %v297 = vunpack.c.l.b16 %v258
    %v298 = vunpack.c.l.b16 %v259
    %v299 = vunpack.c.l.b16 %v260
    %v300 = vunpack.c.l.b16 %v261
    %v301 = vunpack.c.l.b16 %v262
    %v302 = vunpack.c.l.b16 %v263
    %v303 = vunpack.c.l.b16 %v264
    %v304 = vunpack.c.l.b16 %v265
    %v305 = vunpack.c.l.b16 %v266
    %v306 = vunpack.c.l.b16 %v267
    %v307 = vunpack.c.l.b16 %v268
    %v308 = vunpack.c.l.b16 %v269
    %v309 = vunpack.c.l.b16 %v270
    %v310 = vunpack.c.l.b16 %v271
    %v311 = vpack.c.b16 %v296, %v295
    %v312 = vpack.c.b16 %v298, %v297
    %v313 = vpack.c.b16 %v300, %v299
    %v314 = vpack.c.b16 %v302, %v301
    %v315 = vpack.c.b16 %v304, %v303
    %v316 = vpack.c.b16 %v306, %v305
    %v317 = vpack.c.b16 %v308, %v307
    %v318 = vpack.c.b16 %v310, %v309
    %327 = vmatprep.subr.bf16.mxu0 0
    %328 = vmatpush1.bf16.msra.mxu0 %v318
    %329 = vmatprep.subr.bf16.mxu0 0
    %330 = vmatpush1.bf16.msra.mxu0 %v317
    %331 = vmatprep.subr.bf16.mxu0 0
    %332 = vmatpush1.bf16.msra.mxu0 %v316
    %333 = vmatprep.subr.bf16.mxu0 0
    %334 = vmatpush1.bf16.msra.mxu0 %v315
    %335 = vmatprep.subr.bf16.mxu0 0
    %336 = vmatpush1.bf16.msra.mxu0 %v314
    %337 = vmatprep.subr.bf16.mxu0 0
    %338 = vmatpush1.bf16.msra.mxu0 %v313
    %339 = vmatprep.subr.bf16.mxu0 0
    %340 = vmatpush1.bf16.msra.mxu0 %v312
    %341 = vmatprep.subr.bf16.mxu0 0
    %342 = vmatpush1.bf16.msra.mxu0 %v311
    %343 = vmatprep.subr.bf16.mxu0 0
    %344 = vmatpush2.bf16.msra.mxu0 0
    %345 = vmatprep.subr.bf16.mxu0 0
    %346 = vmatpush2.bf16.msra.mxu0 0
    %347 = vmatprep.subr.bf16.mxu0 0
    %348 = vmatpush2.bf16.msra.mxu0 0
    %349 = vmatprep.subr.bf16.mxu0 0
    %350 = vmatpush2.bf16.msra.mxu0 0
    %351 = vmatprep.subr.bf16.mxu0 0
    %352 = vmatpush2.bf16.msra.mxu0 0
    %353 = vmatprep.subr.bf16.mxu0 0
    %354 = vmatpush2.bf16.msra.mxu0 0
    %355 = vmatprep.subr.bf16.mxu0 0
    %356 = vmatpush2.bf16.msra.mxu0 0
    %357 = vmatprep.subr.bf16.mxu0 0
    %358 = vmatpush2.bf16.msra.mxu0 0
    %359 = vmatprep.mubr.bf16.mxu0 0
    %360 = vmatmul.mubr.bf16.gmra.mxu0 %v255
    %v361 = vpop.f32.mrf.mxu0
    %v362 = vadd.f32 %v277, %v361
    %v363 = vpop.f32.mrf.mxu0
    %v364 = vpop.f32.mrf.mxu0
    %v365 = vpop.f32.mrf.mxu0
    %366 = vdwg.mxu0
    %vm367 = vcmask 64512
    %368 = vst.msk [vmem:[#allocation7] sm:$0xff] %vm367, %v362
    // Predicated region
    $region38: #{tpu_custom_call.1} parent=1 // pred_check
      _
    $region39: #{tpu_custom_call.1} parent=1 // pred_check_branch
      %370 = sbr.rel (0) target = $region41
    $region40: #{tpu_custom_call.1} parent=1 // pred_region
      %s372 = ssub.s32 128, 128
      %373 = vsyncadd [#allocation4], %s372
      %s375 = sshll.u32 [#allocation7], 4
      %s376 = int_to_ptr.vmem [resolvable:$true] %s375
      %378 = dma.vmem_to_hbm [thread:$0]  %s376, 128, %s7, [#allocation4]
    $region41: #{tpu_custom_call.1} parent=1 // pred_fallthru
      _
    // Predicated region
    $region42: #{tpu_custom_call.1} parent=1 // pred_check
      _
    $region43: #{tpu_custom_call.1} parent=1 // pred_check_branch
      %380 = sbr.rel (0) target = $region45
    $region44: #{tpu_custom_call.1} parent=1 // pred_region
      %381 = dma.done [#allocation4], 128
    $region45: #{tpu_custom_call.1} parent=1 // pred_fallthru
      _
    %382 = vsyncpa [#allocation3], 1
    %383 = vsyncpa [#allocation6], 1
    %384 = vsyncpa [#allocation4], 1

</llo_original>
